<compile_context>
chip_gen: v7x
topology: tpu7x:2x2x1
jax: 0.10.0
libtpu: 0.0.40
codegen_flags: <defaults>
</compile_context>

<pallas_src>
import functools

import jax
import jax.numpy as jnp
from jax.experimental import pallas as pl
from jax.experimental.pallas import tpu as pltpu


def _masked_photometric_kernel(img1_ref, img2_ref, mask_ref, out_ref,
                               acc_sum, acc_cnt, acc_max,
                               *, s_total, needs_tail):
    # img1_ref/img2_ref: (1, C, TS, 128) native-dtype VMEM tiles
    # mask_ref:          (1, 1, TS, 128) native-dtype VMEM tile
    # out_ref:           (1, 1, 3, 128) f32 block, resident across the j axis
    # acc_*:             (8, 128) f32 VMEM accumulators
    h = pl.program_id(1)
    j = pl.program_id(2)
    nj = pl.num_programs(2)

    @pl.when(j == 0)
    def _():
        acc_sum[...] = jnp.zeros(acc_sum.shape, acc_sum.dtype)
        acc_cnt[...] = jnp.zeros(acc_cnt.shape, acc_cnt.dtype)
        acc_max[...] = jnp.full(acc_max.shape, -jnp.inf, acc_max.dtype)

    # TODO(synk): for bf16 inputs the channel sums / abs-diff / >0 gates could run
    # in native bf16 on v6e/v7x and only widen before accumulation; kept in f32
    # here for portability (v5e has no bf16 VPU) and so the max<=1.0 scale
    # decision is never perturbed by bf16 rounding.
    img1 = img1_ref[0].astype(jnp.float32)     # (C, TS, 128)
    img2 = img2_ref[0].astype(jnp.float32)     # (C, TS, 128)
    m = mask_ref[0, 0].astype(jnp.float32)     # (TS, 128)

    # Channel reductions over the leading axis -> plain VALU adds/maxes.
    sum1 = jnp.sum(img1, axis=0)                       # (TS, 128)
    sum2 = jnp.sum(img2, axis=0)                       # (TS, 128)
    diff = jnp.sum(jnp.abs(img1 - img2), axis=0)       # (TS, 128)
    cmax = jnp.max(img1, axis=0)                       # (TS, 128)

    ok = (sum1 > 0.0) & (sum2 > 0.0)
    ts = diff.shape[0]

    if needs_tail:
        # Fallback path only (S has no usable tile divisor): the last spatial
        # block extends past S; mask the OOB rows.
        row = (jax.lax.broadcasted_iota(jnp.int32, (ts, 128), 0)
               + (h * nj + j) * ts)
        tail = row < s_total
        ok = ok & tail
        cmax = jnp.where(tail, cmax, -jnp.inf)
        # OOB rows may hold arbitrary garbage (incl. NaN/Inf): keep diff*m inside
        # the select so it cannot poison the accumulator.
        wsum = jnp.where(ok, diff * m, 0.0)
        wcnt = jnp.where(ok, m, 0.0)
    else:
        wm = jnp.where(ok, m, 0.0)     # single fused select (perf review)
        wsum = diff * wm
        wcnt = wm

    if ts % 8 == 0:
        # Fold (TS,128) -> (8,128) with pure vreg adds/maxes (no XLU, no big
        # accumulator load/store traffic).
        def fold(x, op):
            return x if ts == 8 else op(x.reshape(ts // 8, 8, 128), axis=0)
        acc_sum[...] = acc_sum[...] + fold(wsum, jnp.sum)
        acc_cnt[...] = acc_cnt[...] + fold(wcnt, jnp.sum)
        acc_max[...] = jnp.maximum(acc_max[...], fold(cmax, jnp.max))
    else:
        # Single-block small-input fallback (ts == full S, S % 8 != 0).
        acc_sum[0:1, :] = acc_sum[0:1, :] + jnp.sum(wsum, axis=0, keepdims=True)
        acc_cnt[0:1, :] = acc_cnt[0:1, :] + jnp.sum(wcnt, axis=0, keepdims=True)
        acc_max[0:1, :] = jnp.maximum(acc_max[0:1, :],
                                      jnp.max(cmax, axis=0, keepdims=True))

    # Epilogue: one cross-sublane (XLU) reduction per (batch, split).
    @pl.when(j == nj - 1)
    def _():
        out_ref[0, 0, 0:1, :] = jnp.sum(acc_sum[...], axis=0, keepdims=True)
        out_ref[0, 0, 1:2, :] = jnp.sum(acc_cnt[...], axis=0, keepdims=True)
        out_ref[0, 0, 2:3, :] = jnp.max(acc_max[...], axis=0, keepdims=True)


def masked_photometric_loss(img_1, img_2, mask, *, tile_rows=512):
    """img_1, img_2: (N, C, H, W); mask: (N, 1, H, W). Returns scalar f32 loss."""
    N, C, H, W = img_1.shape
    HW = H * W
    S = pl.cdiv(HW, 128)          # spatial rows of width 128
    HW_pad = S * 128

    # Never widen the mask to f32 in the wrapper (extra HBM pass + 4x DMA):
    # bool -> uint8 (1 byte); every other dtype streams natively and is widened
    # in VMEM inside the kernel.
    if mask.dtype == jnp.bool_:
        mask = mask.astype(jnp.uint8)

    img1r = img_1.reshape(N, C, HW)
    img2r = img_2.reshape(N, C, HW)
    maskr = mask.reshape(N, 1, HW)

    # TODO(synk): HW % 128 != 0 takes a jnp.pad detour (one extra HBM read+write
    # of every input); HW % 128 == 0 is the fast path.  Zero padding is
    # semantics-preserving: mask=0 there and a 0 cannot flip the max<=1.0 scale.
    if HW_pad != HW:
        pad = ((0, 0), (0, 0), (0, HW_pad - HW))
        img1r = jnp.pad(img1r, pad)
        img2r = jnp.pad(img2r, pad)
        maskr = jnp.pad(maskr, pad)

    img1r = img1r.reshape(N, C, S, 128)
    img2r = img2r.reshape(N, C, S, 128)
    maskr = maskr.reshape(N, 1, S, 128)

    i1b = img_1.dtype.itemsize
    i2b = img_2.dtype.itemsize
    mb = maskr.dtype.itemsize

    # Sublane granularity of the narrowest streamed dtype (packed native tiling).
    gran = {1: 32, 2: 16}.get(min(i1b, i2b, mb), 8)

    # Dtype-aware tile cap: double-buffered input DMA + widened f32 temporaries,
    # kept well inside the 32 MiB scoped-VMEM budget (valid on v5e/v6e/v7x).
    row_in_bytes = 2 * (C * (i1b + i2b) + mb) * 128        # 2x = double buffering
    row_tmp_bytes = (2 * C + 6) * 128 * 4                  # widened f32 + temps
    ts_cap = max(gran,
                 ((20 * 1024 * 1024) // (row_in_bytes + row_tmp_bytes))
                 // gran * gran)
    cap = max(gran, min((tile_rows // gran) * gran, ts_cap))

    if S <= cap:
        ts, gs, needs_tail = S, 1, False
    else:
        # Largest granularity-aligned divisor of S that fits: gs*ts == S exactly,
        # so no per-step tail masking.
        best, t = 0, cap
        while t >= gran:
            if S % t == 0:
                best = t
                break
            t -= gran
        if best >= max(gran, cap // 4):
            ts, gs, needs_tail = best, S // best, False
        else:
            ts, gs, needs_tail = cap, pl.cdiv(S, cap), True

    # Second "parallel" axis over spatial halves when the batch axis alone cannot
    # balance two TensorCores (odd N, e.g. N == 1 on v7x); no-op on v5e/v6e.
    splits = 2 if (N % 2 == 1 and gs >= 2 and gs % 2 == 0) else 1
    gs_per = gs // splits

    kernel = functools.partial(_masked_photometric_kernel,
                               s_total=S, needs_tail=needs_tail)

    cost = pl.CostEstimate(
        flops=2 * N * HW * (6 * C + 8),
        transcendentals=0,
        bytes_accessed=(N * C * HW_pad * (i1b + i2b)
                        + N * HW_pad * mb
                        + N * splits * 3 * 128 * 4),
    )

    parts = pl.pallas_call(
        kernel,
        out_shape=jax.ShapeDtypeStruct((N, splits, 3, 128), jnp.float32),
        grid_spec=pltpu.PrefetchScalarGridSpec(
            num_scalar_prefetch=0,
            grid=(N, splits, gs_per),
            in_specs=[
                pl.BlockSpec((1, C, ts, 128),
                             lambda i, h, j: (i, 0, h * gs_per + j, 0)),
                pl.BlockSpec((1, C, ts, 128),
                             lambda i, h, j: (i, 0, h * gs_per + j, 0)),
                pl.BlockSpec((1, 1, ts, 128),
                             lambda i, h, j: (i, 0, h * gs_per + j, 0)),
            ],
            out_specs=pl.BlockSpec((1, 1, 3, 128), lambda i, h, j: (i, h, 0, 0)),
            scratch_shapes=[
                pltpu.VMEM((8, 128), jnp.float32),   # masked L1-diff partial sums
                pltpu.VMEM((8, 128), jnp.float32),   # valid-pixel partial counts
                pltpu.VMEM((8, 128), jnp.float32),   # running max of img_1
            ],
        ),
        compiler_params=pltpu.CompilerParams(
            dimension_semantics=("parallel", "parallel", "arbitrary"),
            vmem_limit_bytes=32 * 1024 * 1024,
        ),
        cost_estimate=cost,
    )(img1r, img2r, maskr)

    sum_diff = jnp.sum(parts[:, :, 0, :])
    count = jnp.sum(parts[:, :, 1, :])
    max1 = jnp.max(parts[:, :, 2, :])
    scale = jnp.where(max1 <= 1.0, 255.0, 1.0)
    # TODO(synk): torch returns a 0-d tensor when valid pixels exist but a (1,)
    # zeros tensor otherwise; we return a scalar () in both cases.
    loss = jnp.where(count > 0.0,
                     scale * sum_diff / jnp.maximum(count, 1.0),
                     0.0)
    return loss


def masked_photometric_loss_ref(img_1, img_2, mask):
    """Pure-JAX reference mirroring the PyTorch forward."""
    img_1 = img_1.astype(jnp.float32)
    img_2 = img_2.astype(jnp.float32)
    valid = (mask.astype(jnp.float32)
             * (jnp.sum(img_1, axis=1, keepdims=True) > 0.0).astype(jnp.float32)
             * (jnp.sum(img_2, axis=1, keepdims=True) > 0.0).astype(jnp.float32))
    diff = jnp.sum(jnp.abs(img_1 - img_2), axis=1, keepdims=True)
    count = jnp.sum(valid)
    scale = jnp.where(jnp.max(img_1) <= 1.0, 255.0, 1.0)
    return jnp.where(count > 0.0,
                     scale * jnp.sum(diff * valid) / jnp.maximum(count, 1.0),
                     0.0)


if __name__ == "__main__":
    # MaskedPhotometricLoss has no parameters, so nothing to initialize.
    key = jax.random.PRNGKey(0)
    k1, k2, k3, k4, k5, k6, k7 = jax.random.split(key, 7)

    # Case 1: HW % 128 == 0 fast path, single spatial block (ragged sublane fold),
    # f32 mask passthrough, scale=255 branch.
    N, C, H, W = 2, 4, 16, 16
    img_1 = jax.random.uniform(k1, (N, C, H, W), jnp.float32)   # max <= 1 -> 255
    img_2 = jax.random.uniform(k2, (N, C, H, W), jnp.float32)
    img_1 = img_1.at[:, :, :4, :].set(0.0)                      # channel-sum gate
    img_2 = img_2.at[:, :, :, :4].set(0.0)
    mask = (jax.random.uniform(k3, (N, 1, H, W)) > 0.3).astype(jnp.float32)
    loss = jax.block_until_ready(masked_photometric_loss(img_1, img_2, mask))
    ref = masked_photometric_loss_ref(img_1, img_2, mask)
    assert jnp.allclose(loss, ref, rtol=1e-5, atol=1e-5), (loss, ref)

    # Case 2: HW % 128 != 0 (pad path), N=1 with even gs -> spatial split across
    # two "parallel" blocks, ragged last block -> tail-mask fallback, scale=1.
    N2, C2, H2, W2 = 1, 3, 41, 27
    a = jax.random.uniform(k4, (N2, C2, H2, W2), jnp.float32) * 2.0   # max > 1
    b = jax.random.uniform(k5, (N2, C2, H2, W2), jnp.float32)
    m2 = (jax.random.uniform(k6, (N2, 1, H2, W2)) > 0.5).astype(jnp.float32)
    loss2 = jax.block_until_ready(masked_photometric_loss(a, b, m2, tile_rows=8))
    ref2 = masked_photometric_loss_ref(a, b, m2)
    assert jnp.allclose(loss2, ref2, rtol=1e-5, atol=1e-5), (loss2, ref2)

    # Case 3: boolean mask (streams as uint8, widened in-kernel), multi-row block.
    N3, C3, H3, W3 = 2, 4, 32, 32
    c = jax.random.uniform(k7, (N3, C3, H3, W3), jnp.float32)
    d = c * 0.5 + 0.1
    m3 = jax.random.uniform(jax.random.PRNGKey(1), (N3, 1, H3, W3)) > 0.4
    loss3 = jax.block_until_ready(masked_photometric_loss(c, d, m3))
    ref3 = masked_photometric_loss_ref(c, d, m3)
    assert jnp.allclose(loss3, ref3, rtol=1e-5, atol=1e-5), (loss3, ref3)

    # Case 4: empty mask -> zero-loss branch.
    m4 = jnp.zeros_like(m2)
    loss4 = jax.block_until_ready(masked_photometric_loss(a, b, m4))
    ref4 = masked_photometric_loss_ref(a, b, m4)
    assert jnp.allclose(loss4, ref4, rtol=1e-5, atol=1e-5), (loss4, ref4)

    print("KERNEL_OK")
</pallas_src>

<mosaic_0001>
module attributes {stable_mosaic.version = 11 : i64} {
  func.func @_masked_photometric_kernel(%arg0: i32, %arg1: i32, %arg2: i32, %arg3: memref<1x4x2x128xf32, #tpu.memory_space<vmem>>, %arg4: memref<1x4x2x128xf32, #tpu.memory_space<vmem>>, %arg5: memref<1x1x2x128xf32, #tpu.memory_space<vmem>>, %arg6: memref<1x1x3x128xf32, #tpu.memory_space<vmem>>, %arg7: memref<8x128xf32, #tpu.memory_space<vmem>>, %arg8: memref<8x128xf32, #tpu.memory_space<vmem>>, %arg9: memref<8x128xf32, #tpu.memory_space<vmem>>) attributes {dimension_semantics = [#tpu.dimension_semantics<parallel>, #tpu.dimension_semantics<parallel>, #tpu.dimension_semantics<arbitrary>], iteration_bounds = array<i64: 2, 1, 1>, scalar_prefetch = 0 : i64, scratch_operands = 3 : i64, tpu.core_type = #tpu.core_type<tc>, window_params = [{transform_indices = @transform_0, window_bounds = array<i64: 1, 4, 2, 128>}, {transform_indices = @transform_1, window_bounds = array<i64: 1, 4, 2, 128>}, {transform_indices = @transform_2, window_bounds = array<i64: 1, 1, 2, 128>}, {transform_indices = @transform_3, window_bounds = array<i64: 1, 1, 3, 128>}]} {
    %c0_i32 = arith.constant 0 : i32
    %0 = arith.cmpi eq, %arg2, %c0_i32 : i32
    %1 = arith.extui %0 : i1 to i32
    %c0_i32_0 = arith.constant 0 : i32
    %2 = arith.cmpi ne, %1, %c0_i32_0 : i32
    scf.if %2 {
      %cst_35 = arith.constant 0.000000e+00 : f32
      %41 = vector.broadcast %cst_35 : f32 to vector<8x128xf32>
      %c0_36 = arith.constant 0 : index
      %c0_37 = arith.constant 0 : index
      %42 = vector.load %arg7[%c0_36, %c0_37] : memref<8x128xf32, #tpu.memory_space<vmem>>, vector<8x128xf32>
      tpu.vector_store %arg7[%c0_36, %c0_37], %41 {strides = array<i32>} : memref<8x128xf32, #tpu.memory_space<vmem>>, vector<8x128xf32>,
      %cst_38 = arith.constant 0.000000e+00 : f32
      %43 = vector.broadcast %cst_38 : f32 to vector<8x128xf32>
      %c0_39 = arith.constant 0 : index
      %c0_40 = arith.constant 0 : index
      %44 = vector.load %arg8[%c0_39, %c0_40] : memref<8x128xf32, #tpu.memory_space<vmem>>, vector<8x128xf32>
      tpu.vector_store %arg8[%c0_39, %c0_40], %43 {strides = array<i32>} : memref<8x128xf32, #tpu.memory_space<vmem>>, vector<8x128xf32>,
      %cst_41 = arith.constant 0xFF800000 : f32
      %45 = vector.broadcast %cst_41 : f32 to vector<8x128xf32>
      %c0_42 = arith.constant 0 : index
      %c0_43 = arith.constant 0 : index
      %46 = vector.load %arg9[%c0_42, %c0_43] : memref<8x128xf32, #tpu.memory_space<vmem>>, vector<8x128xf32>
      tpu.vector_store %arg9[%c0_42, %c0_43], %45 {strides = array<i32>} : memref<8x128xf32, #tpu.memory_space<vmem>>, vector<8x128xf32>,
    } else {
    }
    %c0 = arith.constant 0 : index
    %c0_1 = arith.constant 0 : index
    %c0_2 = arith.constant 0 : index
    %c0_3 = arith.constant 0 : index
    %3 = vector.load %arg3[%c0, %c0_1, %c0_2, %c0_3] : memref<1x4x2x128xf32, #tpu.memory_space<vmem>>, vector<1x4x2x128xf32>
    %4 = vector.shape_cast %3 : vector<1x4x2x128xf32> to vector<4x2x128xf32>
    %c0_4 = arith.constant 0 : index
    %c0_5 = arith.constant 0 : index
    %c0_6 = arith.constant 0 : index
    %c0_7 = arith.constant 0 : index
    %5 = vector.load %arg4[%c0_4, %c0_5, %c0_6, %c0_7] : memref<1x4x2x128xf32, #tpu.memory_space<vmem>>, vector<1x4x2x128xf32>
    %6 = vector.shape_cast %5 : vector<1x4x2x128xf32> to vector<4x2x128xf32>
    %c0_8 = arith.constant 0 : index
    %c0_9 = arith.constant 0 : index
    %c0_10 = arith.constant 0 : index
    %c0_11 = arith.constant 0 : index
    %7 = vector.load %arg5[%c0_8, %c0_9, %c0_10, %c0_11] : memref<1x1x2x128xf32, #tpu.memory_space<vmem>>, vector<1x1x2x128xf32>
    %8 = vector.shape_cast %7 : vector<1x1x2x128xf32> to vector<2x128xf32>
    %cst = arith.constant dense<0.000000e+00> : vector<2x128xf32>
    %9 = vector.multi_reduction <add>, %4, %cst [0] : vector<4x2x128xf32> to vector<2x128xf32>
    %cst_12 = arith.constant dense<0.000000e+00> : vector<2x128xf32>
    %10 = vector.multi_reduction <add>, %6, %cst_12 [0] : vector<4x2x128xf32> to vector<2x128xf32>
    %11 = arith.subf %4, %6 : vector<4x2x128xf32>
    %12 = math.absf %11 : vector<4x2x128xf32>
    %cst_13 = arith.constant dense<0.000000e+00> : vector<2x128xf32>
    %13 = vector.multi_reduction <add>, %12, %cst_13 [0] : vector<4x2x128xf32> to vector<2x128xf32>
    %cst_14 = arith.constant dense<0xFF800000> : vector<2x128xf32>
    %14 = vector.multi_reduction <maximumf>, %4, %cst_14 [0] : vector<4x2x128xf32> to vector<2x128xf32>
    %cst_15 = arith.constant 0.000000e+00 : f32
    %15 = vector.broadcast %cst_15 : f32 to vector<2x128xf32>
    %16 = arith.cmpf ogt, %9, %15 : vector<2x128xf32>
    %cst_16 = arith.constant 0.000000e+00 : f32
    %17 = vector.broadcast %cst_16 : f32 to vector<2x128xf32>
    %18 = arith.cmpf ogt, %10, %17 : vector<2x128xf32>
    %19 = arith.andi %16, %18 : vector<2x128xi1>
    %cst_17 = arith.constant 0.000000e+00 : f32
    %20 = vector.broadcast %cst_17 : f32 to vector<2x128xf32>
    %21 = arith.select %19, %8, %20 : vector<2x128xi1>, vector<2x128xf32>
    %22 = arith.mulf %13, %21 : vector<2x128xf32>
    %c0_18 = arith.constant 0 : index
    %c0_19 = arith.constant 0 : index
    %23 = vector.load %arg7[%c0_18, %c0_19] : memref<8x128xf32, #tpu.memory_space<vmem>>, vector<1x128xf32>
    %cst_20 = arith.constant dense<0.000000e+00> : vector<128xf32>
    %24 = vector.multi_reduction <add>, %22, %cst_20 [0] : vector<2x128xf32> to vector<128xf32>
    %25 = vector.shape_cast %24 : vector<128xf32> to vector<1x128xf32>
    %26 = arith.addf %23, %25 : vector<1x128xf32>
    %c0_21 = arith.constant 0 : index
    %c0_22 = arith.constant 0 : index
    %27 = vector.load %arg7[%c0_21, %c0_22] : memref<8x128xf32, #tpu.memory_space<vmem>>, vector<1x128xf32>
    tpu.vector_store %arg7[%c0_21, %c0_22], %26 {strides = array<i32>} : memref<8x128xf32, #tpu.memory_space<vmem>>, vector<1x128xf32>,
    %c0_23 = arith.constant 0 : index
    %c0_24 = arith.constant 0 : index
    %28 = vector.load %arg8[%c0_23, %c0_24] : memref<8x128xf32, #tpu.memory_space<vmem>>, vector<1x128xf32>
    %cst_25 = arith.constant dense<0.000000e+00> : vector<128xf32>
    %29 = vector.multi_reduction <add>, %21, %cst_25 [0] : vector<2x128xf32> to vector<128xf32>
    %30 = vector.shape_cast %29 : vector<128xf32> to vector<1x128xf32>
    %31 = arith.addf %28, %30 : vector<1x128xf32>
    %c0_26 = arith.constant 0 : index
    %c0_27 = arith.constant 0 : index
    %32 = vector.load %arg8[%c0_26, %c0_27] : memref<8x128xf32, #tpu.memory_space<vmem>>, vector<1x128xf32>
    tpu.vector_store %arg8[%c0_26, %c0_27], %31 {strides = array<i32>} : memref<8x128xf32, #tpu.memory_space<vmem>>, vector<1x128xf32>,
    %c0_28 = arith.constant 0 : index
    %c0_29 = arith.constant 0 : index
    %33 = vector.load %arg9[%c0_28, %c0_29] : memref<8x128xf32, #tpu.memory_space<vmem>>, vector<1x128xf32>
    %cst_30 = arith.constant dense<0xFF800000> : vector<128xf32>
    %34 = vector.multi_reduction <maximumf>, %14, %cst_30 [0] : vector<2x128xf32> to vector<128xf32>
    %35 = vector.shape_cast %34 : vector<128xf32> to vector<1x128xf32>
    %36 = arith.maximumf %33, %35 : vector<1x128xf32>
    %c0_31 = arith.constant 0 : index
    %c0_32 = arith.constant 0 : index
    %37 = vector.load %arg9[%c0_31, %c0_32] : memref<8x128xf32, #tpu.memory_space<vmem>>, vector<1x128xf32>
    tpu.vector_store %arg9[%c0_31, %c0_32], %36 {strides = array<i32>} : memref<8x128xf32, #tpu.memory_space<vmem>>, vector<1x128xf32>,
    %c0_i32_33 = arith.constant 0 : i32
    %38 = arith.cmpi eq, %arg2, %c0_i32_33 : i32
    %39 = arith.extui %38 : i1 to i32
    %c0_i32_34 = arith.constant 0 : i32
    %40 = arith.cmpi ne, %39, %c0_i32_34 : i32
    scf.if %40 {
      %c0_35 = arith.constant 0 : index
      %c0_36 = arith.constant 0 : index
      %41 = vector.load %arg7[%c0_35, %c0_36] : memref<8x128xf32, #tpu.memory_space<vmem>>, vector<8x128xf32>
      %cst_37 = arith.constant dense<0.000000e+00> : vector<128xf32>
      %42 = vector.multi_reduction <add>, %41, %cst_37 [0] : vector<8x128xf32> to vector<128xf32>
      %43 = vector.shape_cast %42 : vector<128xf32> to vector<1x128xf32>
      %c0_38 = arith.constant 0 : index
      %c0_39 = arith.constant 0 : index
      %c0_40 = arith.constant 0 : index
      %c0_41 = arith.constant 0 : index
      %44 = vector.load %arg6[%c0_38, %c0_39, %c0_40, %c0_41] : memref<1x1x3x128xf32, #tpu.memory_space<vmem>>, vector<1x1x1x128xf32>
      %45 = vector.shape_cast %44 : vector<1x1x1x128xf32> to vector<1x128xf32>
      %46 = vector.shape_cast %43 : vector<1x128xf32> to vector<1x1x1x128xf32>
      tpu.vector_store %arg6[%c0_38, %c0_39, %c0_40, %c0_41], %46 {strides = array<i32>} : memref<1x1x3x128xf32, #tpu.memory_space<vmem>>, vector<1x1x1x128xf32>,
      %c0_42 = arith.constant 0 : index
      %c0_43 = arith.constant 0 : index
      %47 = vector.load %arg8[%c0_42, %c0_43] : memref<8x128xf32, #tpu.memory_space<vmem>>, vector<8x128xf32>
      %cst_44 = arith.constant dense<0.000000e+00> : vector<128xf32>
      %48 = vector.multi_reduction <add>, %47, %cst_44 [0] : vector<8x128xf32> to vector<128xf32>
      %49 = vector.shape_cast %48 : vector<128xf32> to vector<1x128xf32>
      %c0_45 = arith.constant 0 : index
      %c0_46 = arith.constant 0 : index
      %c1 = arith.constant 1 : index
      %c0_47 = arith.constant 0 : index
      %50 = vector.load %arg6[%c0_45, %c0_46, %c1, %c0_47] : memref<1x1x3x128xf32, #tpu.memory_space<vmem>>, vector<1x1x1x128xf32>
      %51 = vector.shape_cast %50 : vector<1x1x1x128xf32> to vector<1x128xf32>
      %52 = vector.shape_cast %49 : vector<1x128xf32> to vector<1x1x1x128xf32>
      tpu.vector_store %arg6[%c0_45, %c0_46, %c1, %c0_47], %52 {strides = array<i32>} : memref<1x1x3x128xf32, #tpu.memory_space<vmem>>, vector<1x1x1x128xf32>,
      %c0_48 = arith.constant 0 : index
      %c0_49 = arith.constant 0 : index
      %53 = vector.load %arg9[%c0_48, %c0_49] : memref<8x128xf32, #tpu.memory_space<vmem>>, vector<8x128xf32>
      %cst_50 = arith.constant dense<0xFF800000> : vector<128xf32>
      %54 = vector.multi_reduction <maximumf>, %53, %cst_50 [0] : vector<8x128xf32> to vector<128xf32>
      %55 = vector.shape_cast %54 : vector<128xf32> to vector<1x128xf32>
      %c0_51 = arith.constant 0 : index
      %c0_52 = arith.constant 0 : index
      %c2 = arith.constant 2 : index
      %c0_53 = arith.constant 0 : index
      %56 = vector.load %arg6[%c0_51, %c0_52, %c2, %c0_53] : memref<1x1x3x128xf32, #tpu.memory_space<vmem>>, vector<1x1x1x128xf32>
      %57 = vector.shape_cast %56 : vector<1x1x1x128xf32> to vector<1x128xf32>
      %58 = vector.shape_cast %55 : vector<1x128xf32> to vector<1x1x1x128xf32>
      tpu.vector_store %arg6[%c0_51, %c0_52, %c2, %c0_53], %58 {strides = array<i32>} : memref<1x1x3x128xf32, #tpu.memory_space<vmem>>, vector<1x1x1x128xf32>,
    } else {
    }
    return
  }
  func.func @transform_0(%arg0: i32, %arg1: i32, %arg2: i32) -> (i32, i32, i32, i32) {
    %c1_i32 = arith.constant 1 : i32
    %0 = arith.muli %arg1, %c1_i32 : i32
    %1 = arith.addi %0, %arg2 : i32
    %c0_i32 = arith.constant 0 : i32
    %c0_i32_0 = arith.constant 0 : i32
    %c0_i32_1 = arith.constant 0 : i32
    return %arg0, %c0_i32, %1, %c0_i32_0 : i32, i32, i32, i32
  }
  func.func @transform_1(%arg0: i32, %arg1: i32, %arg2: i32) -> (i32, i32, i32, i32) {
    %c1_i32 = arith.constant 1 : i32
    %0 = arith.muli %arg1, %c1_i32 : i32
    %1 = arith.addi %0, %arg2 : i32
    %c0_i32 = arith.constant 0 : i32
    %c0_i32_0 = arith.constant 0 : i32
    %c0_i32_1 = arith.constant 0 : i32
    return %arg0, %c0_i32, %1, %c0_i32_0 : i32, i32, i32, i32
  }
  func.func @transform_2(%arg0: i32, %arg1: i32, %arg2: i32) -> (i32, i32, i32, i32) {
    %c1_i32 = arith.constant 1 : i32
    %0 = arith.muli %arg1, %c1_i32 : i32
    %1 = arith.addi %0, %arg2 : i32
    %c0_i32 = arith.constant 0 : i32
    %c0_i32_0 = arith.constant 0 : i32
    %c0_i32_1 = arith.constant 0 : i32
    return %arg0, %c0_i32, %1, %c0_i32_0 : i32, i32, i32, i32
  }
  func.func @transform_3(%arg0: i32, %arg1: i32, %arg2: i32) -> (i32, i32, i32, i32) {
    %c0_i32 = arith.constant 0 : i32
    %c0_i32_0 = arith.constant 0 : i32
    %c0_i32_1 = arith.constant 0 : i32
    return %arg0, %arg1, %c0_i32, %c0_i32_0 : i32, i32, i32, i32
  }
}

</mosaic_0001>

<llo_original>
// kernel: tpu_custom_call.1
$region0: #{tpu_custom_call.1}
  #allocation0 [shape = 'u32[]', space=smem, size = 0x4, offset = 0x4, fixed_abs, tag = 'smem constant byte address 0x4 - core index']
  #allocation1 [shape = 'u32[144,128]{1,0:T(1,128)}', space=vmem, size = 0x12000, scoped, tag = 'internal scratch']
  #allocation2 [shape = 'f32[8,128]{1,0:T(8,128)}', space=vmem, size = 0x1000, scoped, tag = 'scratch operand']
  #allocation3 [shape = 'f32[8,128]{1,0:T(8,128)}', space=vmem, size = 0x1000, scoped, tag = 'scratch operand']
  #allocation4 [shape = 'f32[8,128]{1,0:T(8,128)}', space=vmem, size = 0x1000, scoped, tag = 'scratch operand']
  %s0 = inlined_call_operand.hbm [shape: f32[2,4,2,128], index: 0, kind: input, shape index: {}]
  %s1 = inlined_call_operand.hbm [shape: f32[2,4,2,128], index: 1, kind: input, shape index: {}]
  %s2 = inlined_call_operand.vmem [shape: f32[2,1,2,128], index: 2, kind: input, shape index: {}]
  %s3 = inlined_call_operand.vmem [shape: f32[2,1,3,128], index: 3, kind: output, shape index: {}]
  %s4 = sld [smem:[#allocation0]]
  $region61: #{tpu_custom_call.1} parent=0
    _
  %s6 = ssub.s32 1, %s4
  %s7 = scalar_select 0, %s6, %s4
  $region1: #{tpu_custom_call.1} parent=0
    #allocation5 [shape = 'u8[8192]{0}', space=vmem, size = 0x2000, scoped, tag = 'input window, operand 0']
    #allocation6 [shape = 's32[2]{0}', space=sflag, size = 0x8, scoped, tag = 'scoped memory for tpu_custom_call.1']
    #allocation7 [shape = 'u8[8192]{0}', space=vmem, size = 0x2000, scoped, tag = 'input window, operand 1']
    #allocation8 [shape = 's32[2]{0}', space=sflag, size = 0x8, scoped, tag = 'scoped memory for tpu_custom_call.1']
    %8 = vsyncpa [#allocation6], 0
    %s9 = scalar_lea.sflag [#allocation6], 1
    %10 = vsyncpa %s9, 0
    %11 = vsyncpa [#allocation8], 0
    %s12 = scalar_lea.sflag [#allocation8], 1
    %13 = vsyncpa %s12, 0
    loop: start=0, step=1, limit=4
    $region2: #{tpu_custom_call.1} parent=1 // loop_pre_header
      _
    $region3: #{tpu_custom_call.1} parent=1 // loop_header
      %s15 = sphi 0, %s19
      %p16 = scmp.ge.s32.totalorder %s15, 4
      %s22 = sphi 0, %s41
      %s23 = sphi 0, %s37
      %s24 = sphi 0, %s33
      %s25 = sphi 0, %s22
      %s26 = sphi 0, %s23
      %s27 = sphi 0, %s24
      %s28 = sphi 0, %s25
      %s29 = sphi 0, %s26
      %s30 = sphi 0, %s27
      %s48 = sphi 0, %s50
      %s51 = sphi 0, %s48
      %s52 = sphi 0, %s51
      %s68 = sphi 0, %s52
      %s78 = sphi 0, %s80
      %s81 = sphi 0, %s78
      %s82 = sphi 0, %s81
      %s98 = sphi 0, %s82
      %s108 = sphi 0, %s110
      %s111 = sphi 0, %s108
      %s112 = sphi 0, %s111
      %s128 = sphi 0, %s112
      %s136 = sphi 0, %s138
      %s139 = sphi 0, %s136
      %s140 = sphi 0, %s139
      %s156 = sphi 0, %s140
    $region4: #{tpu_custom_call.1} parent=1 // loop_header_branch
      %18 = sbr.rel (%p16) target = $region8
    $region5: #{tpu_custom_call.1} parent=1 // loop_body
      %s20 = ssub.s32 %s15, 1
      %s21 = ssub.s32 %s15, 2
      %s31 = sadd.s32 1, %s24
      %p32 = scmp.ge.s32.totalorder %s31, 1
      %s33 = scalar_select %p32, 0, %s31
      %s34 = sadd.s32 1, %s23
      %s35 = scalar_select %p32, %s34, %s23
      %p36 = scmp.ge.s32.totalorder %s35, 1
      %s37 = scalar_select %p36, 0, %s35
      %s38 = sadd.s32 1, %s22
      %s39 = scalar_select %p36, %s38, %s22
      %p40 = scmp.ge.s32.totalorder %s39, 2
      %s41 = scalar_select %p40, 0, %s39
      %s42 = sadd.s32 %s23, %s24
      %s43 = sadd.s32 %s37, %s33
      %s44 = ssub.s32 %s22, %s41
      %s45 = ssub.s32 %s42, %s43
      %s46 = sor.u32 %s44, %s45
      %p47 = scmp.eq.s32.totalorder %s46, 0
      %s49 = sadd.s32 %s48, 1
      %s50 = scalar_select %p47, %s48, %s49
      %p53 = pneg %p47
      %p54 = scmp.eq.s32.totalorder %s15, 1
      %p55 = por %p53, %p54
      %p56 = scmp.ne.s32.totalorder %s48, %s51
      %p57 = scmp.eq.s32.totalorder %s15, 0
      %p58 = por %p56, %p57
      %p59 = scmp.ne.s32.totalorder %s48, %s51
      %p60 = scmp.eq.s32.totalorder %s20, 1
      %p61 = por %p59, %p60
      %p62 = scmp.ne.s32.totalorder %s51, %s52
      %p63 = scmp.eq.s32.totalorder %s20, 0
      %p64 = por %p62, %p63
      %p65 = scmp.ne.s32.totalorder %s51, %s52
      %p66 = scmp.eq.s32.totalorder %s21, 1
      %p67 = por %p65, %p66
      %p69 = scmp.ne.s32.totalorder %s52, %s68
      %p70 = scmp.eq.s32.totalorder %s21, 0
      %p71 = por %p69, %p70
      %s72 = sadd.s32 %s23, %s24
      %s73 = sadd.s32 %s37, %s33
      %s74 = ssub.s32 %s22, %s41
      %s75 = ssub.s32 %s72, %s73
      %s76 = sor.u32 %s74, %s75
      %p77 = scmp.eq.s32.totalorder %s76, 0
      %s79 = sadd.s32 %s78, 1
      %s80 = scalar_select %p77, %s78, %s79
      %p83 = pneg %p77
      %p84 = scmp.eq.s32.totalorder %s15, 1
      %p85 = por %p83, %p84
      %p86 = scmp.ne.s32.totalorder %s78, %s81
      %p87 = scmp.eq.s32.totalorder %s15, 0
      %p88 = por %p86, %p87
      %p89 = scmp.ne.s32.totalorder %s78, %s81
      %p90 = scmp.eq.s32.totalorder %s20, 1
      %p91 = por %p89, %p90
      %p92 = scmp.ne.s32.totalorder %s81, %s82
      %p93 = scmp.eq.s32.totalorder %s20, 0
      %p94 = por %p92, %p93
      %p95 = scmp.ne.s32.totalorder %s81, %s82
      %p96 = scmp.eq.s32.totalorder %s21, 1
      %p97 = por %p95, %p96
      %p99 = scmp.ne.s32.totalorder %s82, %s98
      %p100 = scmp.eq.s32.totalorder %s21, 0
      %p101 = por %p99, %p100
      %s102 = sadd.s32 %s23, %s24
      %s103 = sadd.s32 %s37, %s33
      %s104 = ssub.s32 %s22, %s41
      %s105 = ssub.s32 %s102, %s103
      %s106 = sor.u32 %s104, %s105
      %p107 = scmp.eq.s32.totalorder %s106, 0
      %s109 = sadd.s32 %s108, 1
      %s110 = scalar_select %p107, %s108, %s109
      %p113 = pneg %p107
      %p114 = scmp.eq.s32.totalorder %s15, 1
      %p115 = por %p113, %p114
      %p116 = scmp.ne.s32.totalorder %s108, %s111
      %p117 = scmp.eq.s32.totalorder %s15, 0
      %p118 = por %p116, %p117
      %p119 = scmp.ne.s32.totalorder %s108, %s111
      %p120 = scmp.eq.s32.totalorder %s20, 1
      %p121 = por %p119, %p120
      %p122 = scmp.ne.s32.totalorder %s111, %s112
      %p123 = scmp.eq.s32.totalorder %s20, 0
      %p124 = por %p122, %p123
      %p125 = scmp.ne.s32.totalorder %s111, %s112
      %p126 = scmp.eq.s32.totalorder %s21, 1
      %p127 = por %p125, %p126
      %p129 = scmp.ne.s32.totalorder %s112, %s128
      %p130 = scmp.eq.s32.totalorder %s21, 0
      %p131 = por %p129, %p130
      %s132 = ssub.s32 %s22, %s41
      %s133 = ssub.s32 %s23, %s37
      %s134 = sor.u32 %s132, %s133
      %p135 = scmp.eq.s32.totalorder %s134, 0
      %s137 = sadd.s32 %s136, 1
      %s138 = scalar_select %p135, %s136, %s137
      %p141 = pneg %p135
      %p142 = scmp.eq.s32.totalorder %s15, 1
      %p143 = por %p141, %p142
      %p144 = scmp.ne.s32.totalorder %s136, %s139
      %p145 = scmp.eq.s32.totalorder %s15, 0
      %p146 = por %p144, %p145
      %p147 = scmp.ne.s32.totalorder %s136, %s139
      %p148 = scmp.eq.s32.totalorder %s20, 1
      %p149 = por %p147, %p148
      %p150 = scmp.ne.s32.totalorder %s139, %s140
      %p151 = scmp.eq.s32.totalorder %s20, 0
      %p152 = por %p150, %p151
      %p153 = scmp.ne.s32.totalorder %s139, %s140
      %p154 = scmp.eq.s32.totalorder %s21, 1
      %p155 = por %p153, %p154
      %p157 = scmp.ne.s32.totalorder %s140, %s156
      %p158 = scmp.eq.s32.totalorder %s21, 0
      %p159 = por %p157, %p158
      %p160 = scmp.le.s32.totalorder 1, %s15
      %p161 = scmp.lt.s32.totalorder %s15, 3
      %p162 = pnand %p160, %p161
      %p163 = pneg %p162
      // Predicated region
      $region9: #{tpu_custom_call.1} parent=5 // pred_check
        _
      $region10: #{tpu_custom_call.1} parent=5 // pred_check_branch
        %165 = sbr.rel (%p162) target = $region12
      $region11: #{tpu_custom_call.1} parent=5 // pred_region
        %s166 = ssub.s32 %s15, 1
      $region12: #{tpu_custom_call.1} parent=5 // pred_fallthru
        _
      %p167 = scmp.lt.s32.totalorder %s15, 2
      // Predicated region
      $region13: #{tpu_custom_call.1} parent=5 // pred_check
        %p168 = pneg %p167
      $region14: #{tpu_custom_call.1} parent=5 // pred_check_branch
        %170 = sbr.rel (%p168) target = $region16
      $region15: #{tpu_custom_call.1} parent=5 // pred_region
        // Predicated region
        $region17: #{tpu_custom_call.1} parent=15 // pred_check
          %p171 = pneg %p58
        $region18: #{tpu_custom_call.1} parent=15 // pred_check_branch
          %173 = sbr.rel (%p171) target = $region20
        $region19: #{tpu_custom_call.1} parent=15 // pred_region
          %s174 = sand.u32 %s48, 1
          %s175 = scalar_lea.sflag [#allocation6], %s174
          %s176 = sand.u32 %s48, 1
          %s177 = smul.addr %s176, 8
          %s178 = scalar_lea.vmem [#allocation5], %s177
          %s179 = sadd.s32 %s23, %s24
          %s181 = ssub.s32 128, 128
          %182 = vsyncadd %s175, %s181
          %s183 = smul.addr %s22, 4
          %s184 = sadd.s32 %s179, %s183
          %s185 = smul.addr %s184, 32
          %s186 = scalar_lea.hbm %s0, %s185
          %s187 = sshll.u32 %s178, 4
          %s188 = int_to_ptr.vmem [resolvable:$true] %s187
          %193 = dma.hbm_to_vmem [thread:$0]  %s186, 128, %s188, %s175, 32, 32, 2
        $region20: #{tpu_custom_call.1} parent=15 // pred_fallthru
          _
        // Predicated region
        $region21: #{tpu_custom_call.1} parent=15 // pred_check
          %p194 = pneg %p88
        $region22: #{tpu_custom_call.1} parent=15 // pred_check_branch
          %196 = sbr.rel (%p194) target = $region24
        $region23: #{tpu_custom_call.1} parent=15 // pred_region
          %s197 = sand.u32 %s78, 1
          %s198 = scalar_lea.sflag [#allocation8], %s197
          %s199 = sand.u32 %s78, 1
          %s200 = smul.addr %s199, 8
          %s201 = scalar_lea.vmem [#allocation7], %s200
          %s202 = sadd.s32 %s23, %s24
          %s204 = ssub.s32 128, 128
          %205 = vsyncadd %s198, %s204
          %s206 = smul.addr %s22, 4
          %s207 = sadd.s32 %s202, %s206
          %s208 = smul.addr %s207, 32
          %s209 = scalar_lea.hbm %s1, %s208
          %s210 = sshll.u32 %s201, 4
          %s211 = int_to_ptr.vmem [resolvable:$true] %s210
          %216 = dma.hbm_to_vmem [thread:$0]  %s209, 128, %s211, %s198, 32, 32, 2
        $region24: #{tpu_custom_call.1} parent=15 // pred_fallthru
          _
        // Predicated region
        $region25: #{tpu_custom_call.1} parent=15 // pred_check
          %p217 = pneg %p118
        $region26: #{tpu_custom_call.1} parent=15 // pred_check_branch
          %219 = sbr.rel (%p217) target = $region28
        $region27: #{tpu_custom_call.1} parent=15 // pred_region
          %s220 = sadd.s32 %s23, %s24
          %p221 = scmp.lt.s32.totalorder %s22, 1
          %s222 = scalar_select %p221, %s22, 1
          %p223 = scmp.lt.s32.totalorder %s220, 0
          %s224 = scalar_select %p223, %s220, 0
          %s225 = sadd.s32 %s224, %s222
          %s226 = smul.addr %s225, 2
          %s227 = scalar_lea.vmem %s2, %s226
          %s228 = sadd.s32 %s23, %s24
        $region28: #{tpu_custom_call.1} parent=15 // pred_fallthru
          _
      $region16: #{tpu_custom_call.1} parent=5 // pred_fallthru
        _
      %p229 = scmp.le.s32.totalorder 1, %s15
      %p230 = scmp.lt.s32.totalorder %s15, 3
      %p231 = pnand %p229, %p230
      %p232 = pneg %p231
      // Predicated region
      $region29: #{tpu_custom_call.1} parent=5 // pred_check
        _
      $region30: #{tpu_custom_call.1} parent=5 // pred_check_branch
        %234 = sbr.rel (%p231) target = $region32
      $region31: #{tpu_custom_call.1} parent=5 // pred_region
        %s235 = ssub.s32 %s15, 1
        %s236 = sand.u32 %s51, 1
        %s237 = scalar_lea.sflag [#allocation6], %s236
        %s238 = sand.u32 %s51, 1
        %s239 = smul.addr %s238, 8
        %s240 = scalar_lea.vmem [#allocation5], %s239
        // Predicated region
        $region33: #{tpu_custom_call.1} parent=31 // pred_check
          %p241 = pneg %p64
        $region34: #{tpu_custom_call.1} parent=31 // pred_check_branch
          %243 = sbr.rel (%p241) target = $region36
        $region35: #{tpu_custom_call.1} parent=31 // pred_region
          %244 = dma.done %s237, 128
        $region36: #{tpu_custom_call.1} parent=31 // pred_fallthru
          _
        %s245 = sand.u32 %s81, 1
        %s246 = scalar_lea.sflag [#allocation8], %s245
        %s247 = sand.u32 %s81, 1
        %s248 = smul.addr %s247, 8
        %s249 = scalar_lea.vmem [#allocation7], %s248
        // Predicated region
        $region37: #{tpu_custom_call.1} parent=31 // pred_check
          %p250 = pneg %p94
        $region38: #{tpu_custom_call.1} parent=31 // pred_check_branch
          %252 = sbr.rel (%p250) target = $region40
        $region39: #{tpu_custom_call.1} parent=31 // pred_region
          %253 = dma.done %s246, 128
        $region40: #{tpu_custom_call.1} parent=31 // pred_fallthru
          _
        %s254 = sand.u32 %s51, 1
        %s255 = scalar_lea.sflag [#allocation6], %s254
        %s256 = sand.u32 %s51, 1
        %s257 = smul.addr %s256, 8
        %s258 = scalar_lea.vmem [#allocation5], %s257
        %p259 = pneg %p64
        %p260 = pneg %p61
        %s261 = sand.u32 %s81, 1
        %s262 = scalar_lea.sflag [#allocation8], %s261
        %s263 = sand.u32 %s81, 1
        %s264 = smul.addr %s263, 8
        %s265 = scalar_lea.vmem [#allocation7], %s264
        %p266 = pneg %p94
        %p267 = pneg %p91
        %s268 = sadd.s32 %s26, %s27
        %p269 = scmp.lt.s32.totalorder %s25, 1
        %s270 = scalar_select %p269, %s25, 1
        %p271 = scmp.lt.s32.totalorder %s268, 0
        %s272 = scalar_select %p271, %s268, 0
        %s273 = sadd.s32 %s272, %s270
        %s274 = smul.addr %s273, 2
        %s275 = scalar_lea.vmem %s2, %s274
        %p276 = pneg %p124
        %p277 = pneg %p121
        %p278 = pneg %p152
        %p279 = pneg %p149
        %p280 = scmp.lt.s32.totalorder %s25, 1
        %s281 = scalar_select %p280, %s25, 1
        %p282 = scmp.lt.s32.totalorder %s26, 0
        %s283 = scalar_select %p282, %s26, 0
        %s284 = sadd.s32 %s283, %s281
        %s285 = smul.addr %s284, 4
        %s286 = scalar_lea.vmem %s3, %s285
        %s287 = sadd.s32 %s26, %s27
        %s288 = sadd.s32 %s26, %s27
        %s289 = sadd.s32 %s26, %s27
        %p290 = scmp.lt.s32.totalorder %s25, 1
        %s291 = scalar_select %p290, %s25, 1
        %p292 = scmp.lt.s32.totalorder %s289, 0
        %s293 = scalar_select %p292, %s289, 0
        %s294 = sadd.s32 %s293, %s291
        %s295 = smul.addr %s294, 2
        %s296 = scalar_lea.vmem %s2, %s295
        %s297 = sadd.s32 %s26, %s27
        %p298 = scmp.lt.s32.totalorder %s25, 1
        %s299 = scalar_select %p298, %s25, 1
        %p300 = scmp.lt.s32.totalorder %s26, 0
        %s301 = scalar_select %p300, %s26, 0
        %s302 = sadd.s32 %s301, %s299
        %s303 = smul.addr %s302, 4
        %s304 = scalar_lea.vmem %s3, %s303
        %p305 = scmp.eq.s32.totalorder %s27, 0
        // Predicated region
        $region41: #{tpu_custom_call.1} parent=31 // pred_check
          %p306 = pneg %p305
        $region42: #{tpu_custom_call.1} parent=31 // pred_check_branch
          %308 = sbr.rel (%p306) target = $region44
        $region43: #{tpu_custom_call.1} parent=31 // pred_region
          %309 = vst [vmem:[#allocation2] sm:$0xff] 0.0
          %310 = vst [vmem:[#allocation3] sm:$0xff] 0.0
          %311 = vst [vmem:[#allocation4] sm:$0xff] -inf
        $region44: #{tpu_custom_call.1} parent=31 // pred_fallthru
          _
        %v312 = vld [vmem:[%s240] sm:$0x3]
        %v313 = vld [vmem:[%s240 + $0x2] sm:$0x3]
        %v314 = vld [vmem:[%s240 + $0x4] sm:$0x3]
        %v315 = vld [vmem:[%s240 + $0x6] sm:$0x3]
        %v316 = vld [vmem:[%s249] sm:$0x3]
        %v317 = vld [vmem:[%s249 + $0x2] sm:$0x3]
        %v318 = vld [vmem:[%s249 + $0x4] sm:$0x3]
        %v319 = vld [vmem:[%s249 + $0x6] sm:$0x3]
        %v320 = vld [vmem:[%s296] sm:$0x3]
        %vm321 = vcmask 1041408
        %v322 = vsel %vm321, %v312, 0.0
        %v323 = vsel %vm321, %v313, 0.0
        %v324 = vadd.f32 %v322, %v323
        %v325 = vsel %vm321, %v314, 0.0
        %v326 = vadd.f32 %v324, %v325
        %v327 = vsel %vm321, %v315, 0.0
        %v328 = vadd.f32 %v326, %v327
        %v329 = vsel %vm321, %v316, 0.0
        %v330 = vsel %vm321, %v317, 0.0
        %v331 = vadd.f32 %v329, %v330
        %v332 = vsel %vm321, %v318, 0.0
        %v333 = vadd.f32 %v331, %v332
        %v334 = vsel %vm321, %v319, 0.0
        %v335 = vadd.f32 %v333, %v334
        %v336 = vsub.f32 %v312, %v316
        %v337 = vsub.f32 %v313, %v317
        %v338 = vsub.f32 %v314, %v318
        %v339 = vsub.f32 %v315, %v319
        %v340 = vand.u32 2147483647, %v336
        %v341 = vand.u32 2147483647, %v337
        %v342 = vand.u32 2147483647, %v338
        %v343 = vand.u32 2147483647, %v339
        %v344 = vsel %vm321, %v340, 0.0
        %v345 = vsel %vm321, %v341, 0.0
        %v346 = vadd.f32 %v344, %v345
        %v347 = vsel %vm321, %v342, 0.0
        %v348 = vadd.f32 %v346, %v347
        %v349 = vsel %vm321, %v343, 0.0
        %v350 = vadd.f32 %v348, %v349
        %v351 = vsel %vm321, %v312, -inf
        %v352 = vsel %vm321, %v313, -inf
        %v353 = vsel %vm321, %v314, -inf
        %v354 = vsel %vm321, %v315, -inf
        %v355 = vmax.f32 %v351, %v352
        %v356 = vmax.f32 %v353, %v354
        %v357 = vmax.f32 %v355, %v356
        %vm358 = vcmp.gt.f32.partialorder %v328, 0.0
        %vm359 = vcmp.gt.f32.partialorder %v335, 0.0
        %vm360 = vmand %vm358, %vm359
        %v361 = vsel %vm360, %v320, 0.0
        %v362 = vmul.f32 %v350, %v361
        %v363 = vld [vmem:[#allocation2] sm:$0x1]
        %v364 = vsel %vm321, %v362, 0.0
        %v365 = vrot.slane %v364, 4
        %v366 = vadd.f32 %v364, %v365
        %v367 = vrot.slane %v366, 2
        %v368 = vadd.f32 %v366, %v367
        %v369 = vrot.slane %v368, 1
        %v370 = vadd.f32 %v368, %v369
        %v371 = vadd.f32 %v363, %v370
        %372 = vst [vmem:[#allocation2] sm:$0x1] %v371
        %v373 = vld [vmem:[#allocation3] sm:$0x1]
        %v374 = vsel %vm321, %v361, 0.0
        %v375 = vrot.slane %v374, 4
        %v376 = vadd.f32 %v374, %v375
        %v377 = vrot.slane %v376, 2
        %v378 = vadd.f32 %v376, %v377
        %v379 = vrot.slane %v378, 1
        %v380 = vadd.f32 %v378, %v379
        %v381 = vadd.f32 %v373, %v380
        %382 = vst [vmem:[#allocation3] sm:$0x1] %v381
        %v383 = vld [vmem:[#allocation4] sm:$0x1]
        %v384 = vsel %vm321, %v357, -inf
        %v385 = vrot.slane %v384, 4
        %v386 = vmax.f32 %v384, %v385
        %v387 = vrot.slane %v386, 2
        %v388 = vmax.f32 %v386, %v387
        %v389 = vrot.slane %v388, 1
        %v390 = vmax.f32 %v388, %v389
        %v391 = vmax.f32 %v383, %v390
        %392 = vst [vmem:[#allocation4] sm:$0x1] %v391
        // Predicated region
        $region45: #{tpu_custom_call.1} parent=31 // pred_check
          %p393 = pneg %p305
        $region46: #{tpu_custom_call.1} parent=31 // pred_check_branch
          %395 = sbr.rel (%p393) target = $region48
        $region47: #{tpu_custom_call.1} parent=31 // pred_region
          %v396 = vld [vmem:[#allocation2] sm:$0xff]
          %v397 = vrot.slane %v396, 4
          %v398 = vadd.f32 %v396, %v397
          %v399 = vrot.slane %v398, 2
          %v400 = vadd.f32 %v398, %v399
          %v401 = vrot.slane %v400, 1
          %v402 = vadd.f32 %v400, %v401
          %403 = vst [vmem:[%s304] sm:$0x1] %v402
          %v404 = vld [vmem:[#allocation3] sm:$0xff]
          %v405 = vrot.slane %v404, 4
          %v406 = vadd.f32 %v404, %v405
          %v407 = vrot.slane %v406, 2
          %v408 = vadd.f32 %v406, %v407
          %v409 = vrot.slane %v408, 1
          %v410 = vadd.f32 %v408, %v409
          %411 = vst [vmem:[%s304 + $0x1] sm:$0x1] %v410
          %v412 = vld [vmem:[#allocation4] sm:$0xff]
          %v413 = vrot.slane %v412, 4
          %v414 = vmax.f32 %v412, %v413
          %v415 = vrot.slane %v414, 2
          %v416 = vmax.f32 %v414, %v415
          %v417 = vrot.slane %v416, 1
          %v418 = vmax.f32 %v416, %v417
          %419 = vst [vmem:[%s304 + $0x2] sm:$0x1] %v418
        $region48: #{tpu_custom_call.1} parent=31 // pred_fallthru
          _
        %p420 = scmp.lt.s32.totalorder %s25, 1
        %s421 = scalar_select %p420, %s25, 1
        %p422 = scmp.lt.s32.totalorder %s26, 0
        %s423 = scalar_select %p422, %s26, 0
        %s424 = sadd.s32 %s423, %s421
        %s425 = smul.addr %s424, 4
        %s426 = scalar_lea.vmem %s3, %s425
        // Predicated region
        $region49: #{tpu_custom_call.1} parent=31 // pred_check
          %p427 = pneg %p149
        $region50: #{tpu_custom_call.1} parent=31 // pred_check_branch
          %429 = sbr.rel (%p427) target = $region52
        $region51: #{tpu_custom_call.1} parent=31 // pred_region
          _
        $region52: #{tpu_custom_call.1} parent=31 // pred_fallthru
          _
      $region32: #{tpu_custom_call.1} parent=5 // pred_fallthru
        _
      %p430 = scmp.le.s32.totalorder 2, %s15
      // Predicated region
      $region53: #{tpu_custom_call.1} parent=5 // pred_check
        %p431 = pneg %p430
      $region54: #{tpu_custom_call.1} parent=5 // pred_check_branch
        %433 = sbr.rel (%p431) target = $region56
      $region55: #{tpu_custom_call.1} parent=5 // pred_region
        %s434 = ssub.s32 %s15, 2
        // Predicated region
        $region57: #{tpu_custom_call.1} parent=55 // pred_check
          %p435 = pneg %p155
        $region58: #{tpu_custom_call.1} parent=55 // pred_check_branch
          %437 = sbr.rel (%p435) target = $region60
        $region59: #{tpu_custom_call.1} parent=55 // pred_region
          %p438 = scmp.lt.s32.totalorder %s28, 1
          %s439 = scalar_select %p438, %s28, 1
          %p440 = scmp.lt.s32.totalorder %s29, 0
          %s441 = scalar_select %p440, %s29, 0
          %s442 = sadd.s32 %s441, %s439
          %s443 = smul.addr %s442, 4
          %s444 = scalar_lea.vmem %s3, %s443
        $region60: #{tpu_custom_call.1} parent=55 // pred_fallthru
          _
      $region56: #{tpu_custom_call.1} parent=5 // pred_fallthru
        _
    $region6: #{tpu_custom_call.1} parent=1 // loop_footer
      %s19 = sadd.s32 1, %s15
    $region7: #{tpu_custom_call.1} parent=1 // loop_footer_branch
      %14 = sbr.rel target = $region3
    $region8: #{tpu_custom_call.1} parent=1 // loop_exit
      _
    %445 = vsyncpa [#allocation6], 1
    %s446 = scalar_lea.sflag [#allocation6], 1
    %447 = vsyncpa %s446, 1
    %448 = vsyncpa [#allocation8], 1
    %s449 = scalar_lea.sflag [#allocation8], 1
    %450 = vsyncpa %s449, 1

</llo_original>
